<compile_context>
chip_gen: v7x
topology: tpu7x:2x2x1
jax: 0.10.0
libtpu: 0.0.40
codegen_flags: <defaults>
</compile_context>

<pallas_src>
import functools

import jax
import jax.numpy as jnp
from jax.experimental import pallas as pl
from jax.experimental.pallas import tpu as pltpu


def _leaky_relu(v, negative_slope=0.01):
    # max(v, a*v) == leaky_relu(v) for 0 < a < 1.
    return jnp.maximum(v, negative_slope * v)


def _round_up(x, m):
    return ((x + m - 1) // m) * m


def _pad2(a, shape):
    """Zero-pad a 2D array up to `shape` (bottom/right)."""
    return jnp.pad(a, ((0, shape[0] - a.shape[0]), (0, shape[1] - a.shape[1])))


@functools.lru_cache(maxsize=1)
def _large_tile_m():
    """M tile for large batches: 256 fills the 2x256^2 MXU on v6e/v7x; v5e's
    4x128^2 MXU is already saturated by 128 (and has less scoped VMEM)."""
    try:
        kind = jax.devices()[0].device_kind.lower()
    except Exception:
        return 128
    return 256 if ("v6" in kind or "v7" in kind) else 128


# ---------------------------------------------------------------------------
# Kernel
# ---------------------------------------------------------------------------
def base_policy_kernel(x_ref, w1_ref, b1_ref, w2_ref, b2_ref, w3_ref, b3_ref,
                       o_ref):
    # BN is already folded into w1/b1; x_ref and all weights are bf16,
    # biases are f32, all accumulation is f32.
    h1 = _leaky_relu(
        jnp.dot(x_ref[...], w1_ref[...],
                preferred_element_type=jnp.float32) + b1_ref[...])
    h2 = _leaky_relu(
        jnp.dot(h1.astype(jnp.bfloat16), w2_ref[...],
                preferred_element_type=jnp.float32) + b2_ref[...])
    out = (jnp.dot(h2.astype(jnp.bfloat16), w3_ref[...],
                   preferred_element_type=jnp.float32) + b3_ref[...])
    o_ref[...] = out.astype(o_ref.dtype)


# ---------------------------------------------------------------------------
# One-time parameter preparation (padding + casting hoisted out of forward)
# ---------------------------------------------------------------------------
def prepare_params(w1, b1, w2, b2, w3, b3):
    """Pad/cast weights once.  w1/b1 stay f32 (the per-call BN fold needs f32);
    w2/w3 are pre-cast to bf16."""
    input_dim, hidden_dim = w1.shape
    out_dim = w3.shape[1]
    hp = _round_up(hidden_dim, 128)
    op = _round_up(out_dim, 128)
    return {
        "w1": _pad2(w1, (input_dim, hp)),                      # f32
        "b1": _pad2(b1, (1, hp)),                              # f32
        "w2": _pad2(w2, (hp, hp)).astype(jnp.bfloat16),
        "b2": _pad2(b2, (1, hp)),
        "w3": _pad2(w3, (hp, op)).astype(jnp.bfloat16),
        "b3": _pad2(b3, (1, op)),
    }


# ---------------------------------------------------------------------------
# Forward
# ---------------------------------------------------------------------------
@functools.partial(jax.jit, static_argnames=("out_dim", "single_buffer_weights"))
def _forward(x, w1p, b1p, w2p, b2p, w3p, b3p, *, out_dim,
             single_buffer_weights=True):
    batch, input_dim = x.shape
    hp = w1p.shape[1]
    op = w3p.shape[1]

    # ---- BatchNorm1d (training mode, biased variance) folded into fc1 ----
    mean = jnp.mean(x, axis=0, keepdims=True)                  # (1, input_dim)
    var = jnp.mean(jnp.square(x - mean), axis=0, keepdims=True)
    inv_std = jax.lax.rsqrt(var + 1e-5)
    w1f = (w1p * inv_std.reshape(-1, 1)).astype(jnp.bfloat16)  # (input_dim, hp)
    b1f = b1p - jnp.dot(mean * inv_std, w1p)                   # (1, hp), f32

    # ---- batch tiling ----
    if batch >= 128:
        tm = _large_tile_m() if batch >= 256 else 128
    else:
        # bf16 vreg packs [16,128] -> 16-row minimum keeps the tile vreg-dense.
        tm = _round_up(batch, 16)
    padded_batch = _round_up(batch, tm)
    grid_len = padded_batch // tm
    if grid_len > 1 and grid_len % 2 == 1:
        # keep grid length even so v7x's two TensorCores get equal work
        grid_len += 1
        padded_batch = grid_len * tm

    # x streams as bf16 (half the DMA bytes of f32) with zero-padded rows.
    xb = _pad2(x.astype(jnp.bfloat16), (padded_batch, input_dim))

    # ---- VMEM budget (resident weights single-buffered + streamed tiles) ----
    resident_bytes = (input_dim * hp * 2 + hp * hp * 2 + hp * op * 2
                      + (hp + hp + op) * 4)
    streamed_bytes = 2 * (tm * input_dim * 2 + tm * op * 4)   # double-buffered
    vmem_limit = int(min(max(2 * (resident_bytes + streamed_bytes) + (4 << 20),
                             32 << 20), 64 << 20))

    tiled = lambda rows, cols: pl.BlockSpec((rows, cols), lambda i: (i, 0))
    if single_buffer_weights:
        # Constant-index blocks never change -> single buffer saves VMEM.
        resident = lambda shape: pl.BlockSpec(shape, lambda i: (0, 0),
                                              pipeline_mode=pl.Buffered(1))
    else:
        resident = lambda shape: pl.BlockSpec(shape, lambda i: (0, 0))

    out = pl.pallas_call(
        base_policy_kernel,
        out_shape=jax.ShapeDtypeStruct((padded_batch, op), jnp.float32),
        grid=(grid_len,),
        in_specs=[
            # If a very large hidden dim ever exposes the x DMA, bump this to
            # pipeline_mode=pl.Buffered(3) (weights stay single-buffered).
            tiled(tm, input_dim),            # x tile (streamed, bf16)
            resident((input_dim, hp)),       # w1 (BN-folded, bf16)
            resident((1, hp)),               # b1 (BN-folded, f32)
            resident((hp, hp)),              # w2 (bf16)
            resident((1, hp)),               # b2
            resident((hp, op)),              # w3 (bf16)
            resident((1, op)),               # b3
        ],
        out_specs=tiled(tm, op),
        compiler_params=pltpu.CompilerParams(
            dimension_semantics=("parallel",),
            vmem_limit_bytes=vmem_limit),
    )(xb, w1f, b1f, w2p, b2p, w3p, b3p)

    # Strip batch padding and the zero-padded output columns.
    # (Output stays f32; emit bf16 here if the consumer tolerates it.)
    return out[:batch, :out_dim]


def base_policy_forward(x, params, out_dim):
    args = (x, params["w1"], params["b1"], params["w2"], params["b2"],
            params["w3"], params["b3"])
    try:
        out = _forward(*args, out_dim=out_dim, single_buffer_weights=True)
        return jax.block_until_ready(out)
    except Exception:
        # Fallback if this jax build rejects single-buffered pipeline_mode.
        out = _forward(*args, out_dim=out_dim, single_buffer_weights=False)
        return jax.block_until_ready(out)


# ---------------------------------------------------------------------------
# Init / reference
# ---------------------------------------------------------------------------
def init_params(key, input_dim, hidden_dim, out_dim):
    """Deterministic synthetic init (PyTorch Linear-style uniform ranges)."""
    keys = jax.random.split(key, 6)

    def linear(kw, kb, fan_in, fan_out):
        bound = 1.0 / jnp.sqrt(fan_in)
        # stored as (in, out) so the kernel does x @ W directly
        w = jax.random.uniform(kw, (fan_in, fan_out), jnp.float32,
                               -bound, bound)
        b = jax.random.uniform(kb, (1, fan_out), jnp.float32, -bound, bound)
        return w, b

    w1, b1 = linear(keys[0], keys[1], input_dim, hidden_dim)
    w2, b2 = linear(keys[2], keys[3], hidden_dim, hidden_dim)
    w3, b3 = linear(keys[4], keys[5], hidden_dim, out_dim)
    return w1, b1, w2, b2, w3, b3


def reference_forward(x, w1, b1, w2, b2, w3, b3):
    """Pure-JAX f32 reference for correctness check."""
    mean = jnp.mean(x, axis=0, keepdims=True)
    var = jnp.mean((x - mean) ** 2, axis=0, keepdims=True)
    inp = (x - mean) / jnp.sqrt(var + 1e-5)
    neg = 0.01
    lrelu = lambda v: jnp.where(v >= 0, v, neg * v)
    h1 = lrelu(inp @ w1 + b1)
    h2 = lrelu(h1 @ w2 + b2)
    return h2 @ w3 + b3


if __name__ == "__main__":
    key = jax.random.PRNGKey(0)
    k_x, k_p = jax.random.split(key)

    # NOTE: at deployment, stack many agent/timestep observations along the
    # batch axis into one call — per-call overhead dominates at tiny batches.
    batch, input_dim, hidden_dim, out_dim = 8, 32, 64, 16
    x = jax.random.normal(k_x, (batch, input_dim), jnp.float32)
    raw_params = init_params(k_p, input_dim, hidden_dim, out_dim)
    params = prepare_params(*raw_params)          # pad/cast once, not per call

    out = base_policy_forward(x, params, out_dim)

    ref = reference_forward(x, *raw_params)
    assert out.shape == (batch, out_dim)
    # bf16 matmul operands => slightly looser tolerance than pure-f32 path.
    assert jnp.allclose(out, ref, atol=5e-2, rtol=5e-2), (
        float(jnp.max(jnp.abs(out - ref))))

    print("KERNEL_OK")
</pallas_src>

<mosaic_0001>
module attributes {stable_mosaic.version = 11 : i64} {
  func.func @base_policy_kernel(%arg0: i32, %arg1: memref<16x32xbf16, #tpu.memory_space<vmem>>, %arg2: memref<32x128xbf16, #tpu.memory_space<vmem>>, %arg3: memref<1x128xf32, #tpu.memory_space<vmem>>, %arg4: memref<128x128xbf16, #tpu.memory_space<vmem>>, %arg5: memref<1x128xf32, #tpu.memory_space<vmem>>, %arg6: memref<128x128xbf16, #tpu.memory_space<vmem>>, %arg7: memref<1x128xf32, #tpu.memory_space<vmem>>, %arg8: memref<16x128xf32, #tpu.memory_space<vmem>>) attributes {dimension_semantics = [#tpu.dimension_semantics<parallel>], iteration_bounds = array<i64: 1>, scalar_prefetch = 0 : i64, scratch_operands = 0 : i64, tpu.core_type = #tpu.core_type<tc>, window_params = [{transform_indices = @transform_0, window_bounds = array<i64: 16, 32>}, {pipeline_mode = #tpu.pipeline_mode<synchronous>, transform_indices = @transform_1, window_bounds = array<i64: 32, 128>}, {pipeline_mode = #tpu.pipeline_mode<synchronous>, transform_indices = @transform_2, window_bounds = array<i64: 1, 128>}, {pipeline_mode = #tpu.pipeline_mode<synchronous>, transform_indices = @transform_3, window_bounds = array<i64: 128, 128>}, {pipeline_mode = #tpu.pipeline_mode<synchronous>, transform_indices = @transform_4, window_bounds = array<i64: 1, 128>}, {pipeline_mode = #tpu.pipeline_mode<synchronous>, transform_indices = @transform_5, window_bounds = array<i64: 128, 128>}, {pipeline_mode = #tpu.pipeline_mode<synchronous>, transform_indices = @transform_6, window_bounds = array<i64: 1, 128>}, {transform_indices = @transform_7, window_bounds = array<i64: 16, 128>}]} {
    %c0 = arith.constant 0 : index
    %c0_0 = arith.constant 0 : index
    %0 = vector.load %arg1[%c0, %c0_0] : memref<16x32xbf16, #tpu.memory_space<vmem>>, vector<16x32xbf16>
    %c0_1 = arith.constant 0 : index
    %c0_2 = arith.constant 0 : index
    %1 = vector.load %arg2[%c0_1, %c0_2] : memref<32x128xbf16, #tpu.memory_space<vmem>>, vector<32x128xbf16>
    %cst = arith.constant dense<0.000000e+00> : vector<16x128xf32>
    %2 = tpu.matmul %0, %1, %cst {dimension_numbers = #tpu.dot_dimension_numbers<[1], [0], [0], [1], [0, 0, 1, 1], [], []>} : vector<16x32xbf16>, vector<32x128xbf16>, vector<16x128xf32> -> vector<16x128xf32>
    %c0_3 = arith.constant 0 : index
    %c0_4 = arith.constant 0 : index
    %3 = vector.load %arg3[%c0_3, %c0_4] : memref<1x128xf32, #tpu.memory_space<vmem>>, vector<1x128xf32>
    %4 = vector.broadcast %3 : vector<1x128xf32> to vector<16x128xf32>
    %5 = arith.addf %2, %4 : vector<16x128xf32>
    %cst_5 = arith.constant 0.00999999977 : f32
    %6 = vector.broadcast %cst_5 : f32 to vector<16x128xf32>
    %7 = arith.mulf %6, %5 : vector<16x128xf32>
    %8 = arith.maximumf %5, %7 : vector<16x128xf32>
    %9 = arith.truncf %8 : vector<16x128xf32> to vector<16x128xbf16>
    %c0_6 = arith.constant 0 : index
    %c0_7 = arith.constant 0 : index
    %10 = vector.load %arg4[%c0_6, %c0_7] : memref<128x128xbf16, #tpu.memory_space<vmem>>, vector<128x128xbf16>
    %cst_8 = arith.constant dense<0.000000e+00> : vector<16x128xf32>
    %11 = tpu.matmul %9, %10, %cst_8 {dimension_numbers = #tpu.dot_dimension_numbers<[1], [0], [0], [1], [0, 0, 1, 1], [], []>} : vector<16x128xbf16>, vector<128x128xbf16>, vector<16x128xf32> -> vector<16x128xf32>
    %c0_9 = arith.constant 0 : index
    %c0_10 = arith.constant 0 : index
    %12 = vector.load %arg5[%c0_9, %c0_10] : memref<1x128xf32, #tpu.memory_space<vmem>>, vector<1x128xf32>
    %13 = vector.broadcast %12 : vector<1x128xf32> to vector<16x128xf32>
    %14 = arith.addf %11, %13 : vector<16x128xf32>
    %cst_11 = arith.constant 0.00999999977 : f32
    %15 = vector.broadcast %cst_11 : f32 to vector<16x128xf32>
    %16 = arith.mulf %15, %14 : vector<16x128xf32>
    %17 = arith.maximumf %14, %16 : vector<16x128xf32>
    %18 = arith.truncf %17 : vector<16x128xf32> to vector<16x128xbf16>
    %c0_12 = arith.constant 0 : index
    %c0_13 = arith.constant 0 : index
    %19 = vector.load %arg6[%c0_12, %c0_13] : memref<128x128xbf16, #tpu.memory_space<vmem>>, vector<128x128xbf16>
    %cst_14 = arith.constant dense<0.000000e+00> : vector<16x128xf32>
    %20 = tpu.matmul %18, %19, %cst_14 {dimension_numbers = #tpu.dot_dimension_numbers<[1], [0], [0], [1], [0, 0, 1, 1], [], []>} : vector<16x128xbf16>, vector<128x128xbf16>, vector<16x128xf32> -> vector<16x128xf32>
    %c0_15 = arith.constant 0 : index
    %c0_16 = arith.constant 0 : index
    %21 = vector.load %arg7[%c0_15, %c0_16] : memref<1x128xf32, #tpu.memory_space<vmem>>, vector<1x128xf32>
    %22 = vector.broadcast %21 : vector<1x128xf32> to vector<16x128xf32>
    %23 = arith.addf %20, %22 : vector<16x128xf32>
    %c0_17 = arith.constant 0 : index
    %c0_18 = arith.constant 0 : index
    %24 = vector.load %arg8[%c0_17, %c0_18] : memref<16x128xf32, #tpu.memory_space<vmem>>, vector<16x128xf32>
    tpu.vector_store %arg8[%c0_17, %c0_18], %23 {strides = array<i32>} : memref<16x128xf32, #tpu.memory_space<vmem>>, vector<16x128xf32>,
    return
  }
  func.func @transform_0(%arg0: i32) -> (i32, i32) {
    %c0_i32 = arith.constant 0 : i32
    %c0_i32_0 = arith.constant 0 : i32
    return %arg0, %c0_i32 : i32, i32
  }
  func.func @transform_1(%arg0: i32) -> (i32, i32) {
    %c0_i32 = arith.constant 0 : i32
    %c0_i32_0 = arith.constant 0 : i32
    %c0_i32_1 = arith.constant 0 : i32
    return %c0_i32, %c0_i32_0 : i32, i32
  }
  func.func @transform_2(%arg0: i32) -> (i32, i32) {
    %c0_i32 = arith.constant 0 : i32
    %c0_i32_0 = arith.constant 0 : i32
    %c0_i32_1 = arith.constant 0 : i32
    return %c0_i32, %c0_i32_0 : i32, i32
  }
  func.func @transform_3(%arg0: i32) -> (i32, i32) {
    %c0_i32 = arith.constant 0 : i32
    %c0_i32_0 = arith.constant 0 : i32
    %c0_i32_1 = arith.constant 0 : i32
    return %c0_i32, %c0_i32_0 : i32, i32
  }
  func.func @transform_4(%arg0: i32) -> (i32, i32) {
    %c0_i32 = arith.constant 0 : i32
    %c0_i32_0 = arith.constant 0 : i32
    %c0_i32_1 = arith.constant 0 : i32
    return %c0_i32, %c0_i32_0 : i32, i32
  }
  func.func @transform_5(%arg0: i32) -> (i32, i32) {
    %c0_i32 = arith.constant 0 : i32
    %c0_i32_0 = arith.constant 0 : i32
    %c0_i32_1 = arith.constant 0 : i32
    return %c0_i32, %c0_i32_0 : i32, i32
  }
  func.func @transform_6(%arg0: i32) -> (i32, i32) {
    %c0_i32 = arith.constant 0 : i32
    %c0_i32_0 = arith.constant 0 : i32
    %c0_i32_1 = arith.constant 0 : i32
    return %c0_i32, %c0_i32_0 : i32, i32
  }
  func.func @transform_7(%arg0: i32) -> (i32, i32) {
    %c0_i32 = arith.constant 0 : i32
    %c0_i32_0 = arith.constant 0 : i32
    return %arg0, %c0_i32 : i32, i32
  }
}

module attributes {stable_mosaic.version = 11 : i64} {
  func.func @base_policy_kernel(%arg0: i32, %arg1: memref<16x32xbf16, #tpu.memory_space<vmem>>, %arg2: memref<32x128xbf16, #tpu.memory_space<vmem>>, %arg3: memref<1x128xf32, #tpu.memory_space<vmem>>, %arg4: memref<128x128xbf16, #tpu.memory_space<vmem>>, %arg5: memref<1x128xf32, #tpu.memory_space<vmem>>, %arg6: memref<128x128xbf16, #tpu.memory_space<vmem>>, %arg7: memref<1x128xf32, #tpu.memory_space<vmem>>, %arg8: memref<16x128xf32, #tpu.memory_space<vmem>>) attributes {dimension_semantics = [#tpu.dimension_semantics<parallel>], iteration_bounds = array<i64: 1>, scalar_prefetch = 0 : i64, scratch_operands = 0 : i64, tpu.core_type = #tpu.core_type<tc>, window_params = [{transform_indices = @transform_0, window_bounds = array<i64: 16, 32>}, {pipeline_mode = #tpu.pipeline_mode<synchronous>, transform_indices = @transform_1, window_bounds = array<i64: 32, 128>}, {pipeline_mode = #tpu.pipeline_mode<synchronous>, transform_indices = @transform_2, window_bounds = array<i64: 1, 128>}, {pipeline_mode = #tpu.pipeline_mode<synchronous>, transform_indices = @transform_3, window_bounds = array<i64: 128, 128>}, {pipeline_mode = #tpu.pipeline_mode<synchronous>, transform_indices = @transform_4, window_bounds = array<i64: 1, 128>}, {pipeline_mode = #tpu.pipeline_mode<synchronous>, transform_indices = @transform_5, window_bounds = array<i64: 128, 128>}, {pipeline_mode = #tpu.pipeline_mode<synchronous>, transform_indices = @transform_6, window_bounds = array<i64: 1, 128>}, {transform_indices = @transform_7, window_bounds = array<i64: 16, 128>}]} {
    %c0 = arith.constant 0 : index
    %c0_0 = arith.constant 0 : index
    %0 = vector.load %arg1[%c0, %c0_0] : memref<16x32xbf16, #tpu.memory_space<vmem>>, vector<16x32xbf16>
    %c0_1 = arith.constant 0 : index
    %c0_2 = arith.constant 0 : index
    %1 = vector.load %arg2[%c0_1, %c0_2] : memref<32x128xbf16, #tpu.memory_space<vmem>>, vector<32x128xbf16>
    %cst = arith.constant dense<0.000000e+00> : vector<16x128xf32>
    %2 = tpu.matmul %0, %1, %cst {dimension_numbers = #tpu.dot_dimension_numbers<[1], [0], [0], [1], [0, 0, 1, 1], [], []>} : vector<16x32xbf16>, vector<32x128xbf16>, vector<16x128xf32> -> vector<16x128xf32>
    %c0_3 = arith.constant 0 : index
    %c0_4 = arith.constant 0 : index
    %3 = vector.load %arg3[%c0_3, %c0_4] : memref<1x128xf32, #tpu.memory_space<vmem>>, vector<1x128xf32>
    %4 = vector.broadcast %3 : vector<1x128xf32> to vector<16x128xf32>
    %5 = arith.addf %2, %4 : vector<16x128xf32>
    %cst_5 = arith.constant 0.00999999977 : f32
    %6 = vector.broadcast %cst_5 : f32 to vector<16x128xf32>
    %7 = arith.mulf %6, %5 : vector<16x128xf32>
    %8 = arith.maximumf %5, %7 : vector<16x128xf32>
    %9 = arith.truncf %8 : vector<16x128xf32> to vector<16x128xbf16>
    %c0_6 = arith.constant 0 : index
    %c0_7 = arith.constant 0 : index
    %10 = vector.load %arg4[%c0_6, %c0_7] : memref<128x128xbf16, #tpu.memory_space<vmem>>, vector<128x128xbf16>
    %cst_8 = arith.constant dense<0.000000e+00> : vector<16x128xf32>
    %11 = tpu.matmul %9, %10, %cst_8 {dimension_numbers = #tpu.dot_dimension_numbers<[1], [0], [0], [1], [0, 0, 1, 1], [], []>} : vector<16x128xbf16>, vector<128x128xbf16>, vector<16x128xf32> -> vector<16x128xf32>
    %c0_9 = arith.constant 0 : index
    %c0_10 = arith.constant 0 : index
    %12 = vector.load %arg5[%c0_9, %c0_10] : memref<1x128xf32, #tpu.memory_space<vmem>>, vector<1x128xf32>
    %13 = vector.broadcast %12 : vector<1x128xf32> to vector<16x128xf32>
    %14 = arith.addf %11, %13 : vector<16x128xf32>
    %cst_11 = arith.constant 0.00999999977 : f32
    %15 = vector.broadcast %cst_11 : f32 to vector<16x128xf32>
    %16 = arith.mulf %15, %14 : vector<16x128xf32>
    %17 = arith.maximumf %14, %16 : vector<16x128xf32>
    %18 = arith.truncf %17 : vector<16x128xf32> to vector<16x128xbf16>
    %c0_12 = arith.constant 0 : index
    %c0_13 = arith.constant 0 : index
    %19 = vector.load %arg6[%c0_12, %c0_13] : memref<128x128xbf16, #tpu.memory_space<vmem>>, vector<128x128xbf16>
    %cst_14 = arith.constant dense<0.000000e+00> : vector<16x128xf32>
    %20 = tpu.matmul %18, %19, %cst_14 {dimension_numbers = #tpu.dot_dimension_numbers<[1], [0], [0], [1], [0, 0, 1, 1], [], []>} : vector<16x128xbf16>, vector<128x128xbf16>, vector<16x128xf32> -> vector<16x128xf32>
    %c0_15 = arith.constant 0 : index
    %c0_16 = arith.constant 0 : index
    %21 = vector.load %arg7[%c0_15, %c0_16] : memref<1x128xf32, #tpu.memory_space<vmem>>, vector<1x128xf32>
    %22 = vector.broadcast %21 : vector<1x128xf32> to vector<16x128xf32>
    %23 = arith.addf %20, %22 : vector<16x128xf32>
    %c0_17 = arith.constant 0 : index
    %c0_18 = arith.constant 0 : index
    %24 = vector.load %arg8[%c0_17, %c0_18] : memref<16x128xf32, #tpu.memory_space<vmem>>, vector<16x128xf32>
    tpu.vector_store %arg8[%c0_17, %c0_18], %23 {strides = array<i32>} : memref<16x128xf32, #tpu.memory_space<vmem>>, vector<16x128xf32>,
    return
  }
  func.func @transform_0(%arg0: i32) -> (i32, i32) {
    %c0_i32 = arith.constant 0 : i32
    %c0_i32_0 = arith.constant 0 : i32
    return %arg0, %c0_i32 : i32, i32
  }
  func.func @transform_1(%arg0: i32) -> (i32, i32) {
    %c0_i32 = arith.constant 0 : i32
    %c0_i32_0 = arith.constant 0 : i32
    %c0_i32_1 = arith.constant 0 : i32
    return %c0_i32, %c0_i32_0 : i32, i32
  }
  func.func @transform_2(%arg0: i32) -> (i32, i32) {
    %c0_i32 = arith.constant 0 : i32
    %c0_i32_0 = arith.constant 0 : i32
    %c0_i32_1 = arith.constant 0 : i32
    return %c0_i32, %c0_i32_0 : i32, i32
  }
  func.func @transform_3(%arg0: i32) -> (i32, i32) {
    %c0_i32 = arith.constant 0 : i32
    %c0_i32_0 = arith.constant 0 : i32
    %c0_i32_1 = arith.constant 0 : i32
    return %c0_i32, %c0_i32_0 : i32, i32
  }
  func.func @transform_4(%arg0: i32) -> (i32, i32) {
    %c0_i32 = arith.constant 0 : i32
    %c0_i32_0 = arith.constant 0 : i32
    %c0_i32_1 = arith.constant 0 : i32
    return %c0_i32, %c0_i32_0 : i32, i32
  }
  func.func @transform_5(%arg0: i32) -> (i32, i32) {
    %c0_i32 = arith.constant 0 : i32
    %c0_i32_0 = arith.constant 0 : i32
    %c0_i32_1 = arith.constant 0 : i32
    return %c0_i32, %c0_i32_0 : i32, i32
  }
  func.func @transform_6(%arg0: i32) -> (i32, i32) {
    %c0_i32 = arith.constant 0 : i32
    %c0_i32_0 = arith.constant 0 : i32
    %c0_i32_1 = arith.constant 0 : i32
    return %c0_i32, %c0_i32_0 : i32, i32
  }
  func.func @transform_7(%arg0: i32) -> (i32, i32) {
    %c0_i32 = arith.constant 0 : i32
    %c0_i32_0 = arith.constant 0 : i32
    return %arg0, %c0_i32 : i32, i32
  }
}

</mosaic_0001>

<llo_original>
// kernel: _forward.1
$region0: #{_forward.1}
  #allocation0 [shape = 'u32[]', space=smem, size = 0x4, offset = 0x4, fixed_abs, tag = 'smem constant byte address 0x4 - core index']
  #allocation1 [shape = 'u32[144,128]{1,0:T(1,128)}', space=vmem, size = 0x12000, scoped, tag = 'internal scratch']
  %s0 = inlined_call_operand.vmem [shape: bf16[16,32], index: 0, kind: input, shape index: {}]
  %s1 = inlined_call_operand.vmem [shape: bf16[32,128], index: 1, kind: input, shape index: {}]
  %s2 = inlined_call_operand.vmem [shape: f32[1,128], index: 2, kind: input, shape index: {}]
  %s3 = inlined_call_operand.vmem [shape: bf16[128,128], index: 3, kind: input, shape index: {}]
  %s4 = inlined_call_operand.vmem [shape: f32[1,128], index: 4, kind: input, shape index: {}]
  %s5 = inlined_call_operand.vmem [shape: bf16[128,128], index: 5, kind: input, shape index: {}]
  %s6 = inlined_call_operand.vmem [shape: f32[1,128], index: 6, kind: input, shape index: {}]
  %s7 = inlined_call_operand.vmem [shape: f32[16,128], index: 7, kind: output, shape index: {}]
  %s8 = sld [smem:[#allocation0]]
  $region38: #{_forward.1} parent=0
    _
  %s10 = ssub.s32 1, %s8
  %s11 = scalar_select 0, %s10, %s8
  // Predicated region
  $region2: #{_forward.1} parent=0 // pred_check
    _
  $region3: #{_forward.1} parent=0 // pred_check_branch
    %13 = sbr.rel (0) target = $region5
  $region4: #{_forward.1} parent=0 // pred_region
    _
  $region5: #{_forward.1} parent=0 // pred_fallthru
    _
  // Predicated region
  $region6: #{_forward.1} parent=0 // pred_check
    _
  $region7: #{_forward.1} parent=0 // pred_check_branch
    %15 = sbr.rel (0) target = $region9
  $region8: #{_forward.1} parent=0 // pred_region
    _
  $region9: #{_forward.1} parent=0 // pred_fallthru
    _
  // Predicated region
  $region10: #{_forward.1} parent=0 // pred_check
    _
  $region11: #{_forward.1} parent=0 // pred_check_branch
    %17 = sbr.rel (0) target = $region13
  $region12: #{_forward.1} parent=0 // pred_region
    _
  $region13: #{_forward.1} parent=0 // pred_fallthru
    _
  // Predicated region
  $region14: #{_forward.1} parent=0 // pred_check
    _
  $region15: #{_forward.1} parent=0 // pred_check_branch
    %19 = sbr.rel (0) target = $region17
  $region16: #{_forward.1} parent=0 // pred_region
    _
  $region17: #{_forward.1} parent=0 // pred_fallthru
    _
  // Predicated region
  $region18: #{_forward.1} parent=0 // pred_check
    _
  $region19: #{_forward.1} parent=0 // pred_check_branch
    %21 = sbr.rel (0) target = $region21
  $region20: #{_forward.1} parent=0 // pred_region
    _
  $region21: #{_forward.1} parent=0 // pred_fallthru
    _
  // Predicated region
  $region22: #{_forward.1} parent=0 // pred_check
    _
  $region23: #{_forward.1} parent=0 // pred_check_branch
    %23 = sbr.rel (0) target = $region25
  $region24: #{_forward.1} parent=0 // pred_region
    _
  $region25: #{_forward.1} parent=0 // pred_fallthru
    _
  // Predicated region
  $region26: #{_forward.1} parent=0 // pred_check
    _
  $region27: #{_forward.1} parent=0 // pred_check_branch
    %25 = sbr.rel (0) target = $region29
  $region28: #{_forward.1} parent=0 // pred_region
    _
  $region29: #{_forward.1} parent=0 // pred_fallthru
    _
  %v27 = vld [vmem:[%s0] sm:$0xf]
  %v28 = vld [vmem:[%s0 + $0x4] sm:$0xf]
  %v29 = vld [vmem:[%s1] sm:$0xf]
  %v30 = vld [vmem:[%s1 + $0x4] sm:$0xf]
  %v31 = vld [vmem:[%s1 + $0x8] sm:$0xf]
  %v32 = vld [vmem:[%s1 + $0xc] sm:$0xf]
  %v33 = vld [vmem:[%s2] sm:$0x1]
  %v35 = vlaneseq
  %v36 = vshrl.u32 %v35, 7
  %v37 = vsub.s32 0, %v36
  %v38 = vrot.slane %v33, %v37
  %v42 = vunpack.c.l.b16 %v27
  %v43 = vunpack.c.l.b16 %v28
  %v44 = vpack.c.b16 %v43, %v42
  %v49 = vunpack.c.l.b16 %v29
  %v50 = vunpack.c.l.b16 %v30
  %v51 = vunpack.c.l.b16 %v31
  %v52 = vunpack.c.l.b16 %v32
  %v53 = vpack.c.b16 %v50, %v49
  %v54 = vpack.c.b16 %v52, %v51
  %vm57 = vcmask 261120
  %v59 = vsel %vm57, %v44, 0
  %61 = vmatprep.subr.bf16.mxu0 0
  %62 = vmatpush1.bf16.msra.mxu0 %v53
  %63 = vmatprep.subr.bf16.mxu0 0
  %64 = vmatpush1.bf16.msra.mxu0 %v54
  %65 = vmatprep.subr.bf16.mxu0 0
  %66 = vmatpush1.bf16.msra.mxu0 0
  %67 = vmatprep.subr.bf16.mxu0 0
  %68 = vmatpush1.bf16.msra.mxu0 0
  %69 = vmatprep.subr.bf16.mxu0 0
  %70 = vmatpush1.bf16.msra.mxu0 0
  %71 = vmatprep.subr.bf16.mxu0 0
  %72 = vmatpush1.bf16.msra.mxu0 0
  %73 = vmatprep.subr.bf16.mxu0 0
  %74 = vmatpush1.bf16.msra.mxu0 0
  %75 = vmatprep.subr.bf16.mxu0 0
  %76 = vmatpush1.bf16.msra.mxu0 0
  %77 = vmatprep.subr.bf16.mxu0 0
  %78 = vmatpush1.bf16.msra.mxu0 0
  %79 = vmatprep.subr.bf16.mxu0 0
  %80 = vmatpush1.bf16.msra.mxu0 0
  %81 = vmatprep.subr.bf16.mxu0 0
  %82 = vmatpush1.bf16.msra.mxu0 0
  %83 = vmatprep.subr.bf16.mxu0 0
  %84 = vmatpush1.bf16.msra.mxu0 0
  %85 = vmatprep.subr.bf16.mxu0 0
  %86 = vmatpush1.bf16.msra.mxu0 0
  %87 = vmatprep.subr.bf16.mxu0 0
  %88 = vmatpush1.bf16.msra.mxu0 0
  %89 = vmatprep.subr.bf16.mxu0 0
  %90 = vmatpush1.bf16.msra.mxu0 0
  %91 = vmatprep.subr.bf16.mxu0 0
  %92 = vmatpush1.bf16.msra.mxu0 0
  %93 = vmatprep.mubr.bf16.mxu0 0
  %94 = vmatmul.mubr.bf16.gmra.mrb[0].mxu0 %v59
  %v95 = vpop.f32.mrb[0].mxu0
  %v96 = vadd.f32 %v38, %v95
  %v97 = vpop.f32.mrb[0].mxu0
  %v98 = vpop.f32.mrb[0].mxu0
  %v99 = vadd.f32 %v38, %v98
  %v100 = vpop.f32.mrb[0].mxu0
  %101 = vdwg.mxu0
  %v102 = vmul.f32 %v96, 0.01
  %v103 = vmul.f32 %v99, 0.01
  %v104 = vmax.f32 %v96, %v102
  %v105 = vmax.f32 %v99, %v103
  %v106 = vpack.c.bf16 %v105, %v104
  %v107 = vld [vmem:[%s3] sm:$0xf]
  %v108 = vld [vmem:[%s3 + $0x4] sm:$0xf]
  %v109 = vld [vmem:[%s3 + $0x8] sm:$0xf]
  %v110 = vld [vmem:[%s3 + $0xc] sm:$0xf]
  %v111 = vld [vmem:[%s3 + $0x10] sm:$0xf]
  %v112 = vld [vmem:[%s3 + $0x14] sm:$0xf]
  %v113 = vld [vmem:[%s3 + $0x18] sm:$0xf]
  %v114 = vld [vmem:[%s3 + $0x1c] sm:$0xf]
  %v115 = vld [vmem:[%s3 + $0x20] sm:$0xf]
  %v116 = vld [vmem:[%s3 + $0x24] sm:$0xf]
  %v117 = vld [vmem:[%s3 + $0x28] sm:$0xf]
  %v118 = vld [vmem:[%s3 + $0x2c] sm:$0xf]
  %v119 = vld [vmem:[%s3 + $0x30] sm:$0xf]
  %v120 = vld [vmem:[%s3 + $0x34] sm:$0xf]
  %v121 = vld [vmem:[%s3 + $0x38] sm:$0xf]
  %v122 = vld [vmem:[%s3 + $0x3c] sm:$0xf]
  %v123 = vld [vmem:[%s4] sm:$0x1]
  %v125 = vlaneseq
  %v126 = vshrl.u32 %v125, 7
  %v127 = vsub.s32 0, %v126
  %v128 = vrot.slane %v123, %v127
  %v146 = vunpack.c.l.b16 %v107
  %v147 = vunpack.c.l.b16 %v108
  %v148 = vunpack.c.l.b16 %v109
  %v149 = vunpack.c.l.b16 %v110
  %v150 = vunpack.c.l.b16 %v111
  %v151 = vunpack.c.l.b16 %v112
  %v152 = vunpack.c.l.b16 %v113
  %v153 = vunpack.c.l.b16 %v114
  %v154 = vunpack.c.l.b16 %v115
  %v155 = vunpack.c.l.b16 %v116
  %v156 = vunpack.c.l.b16 %v117
  %v157 = vunpack.c.l.b16 %v118
  %v158 = vunpack.c.l.b16 %v119
  %v159 = vunpack.c.l.b16 %v120
  %v160 = vunpack.c.l.b16 %v121
  %v161 = vunpack.c.l.b16 %v122
  %v162 = vpack.c.b16 %v147, %v146
  %v163 = vpack.c.b16 %v149, %v148
  %v164 = vpack.c.b16 %v151, %v150
  %v165 = vpack.c.b16 %v153, %v152
  %v166 = vpack.c.b16 %v155, %v154
  %v167 = vpack.c.b16 %v157, %v156
  %v168 = vpack.c.b16 %v159, %v158
  %v169 = vpack.c.b16 %v161, %v160
  %178 = vmatprep.subr.bf16.mxu0 0
  %179 = vmatpush1.bf16.msra.mxu0 %v162
  %180 = vmatprep.subr.bf16.mxu0 0
  %181 = vmatpush1.bf16.msra.mxu0 %v163
  %182 = vmatprep.subr.bf16.mxu0 0
  %183 = vmatpush1.bf16.msra.mxu0 %v164
  %184 = vmatprep.subr.bf16.mxu0 0
  %185 = vmatpush1.bf16.msra.mxu0 %v165
  %186 = vmatprep.subr.bf16.mxu0 0
  %187 = vmatpush1.bf16.msra.mxu0 %v166
  %188 = vmatprep.subr.bf16.mxu0 0
  %189 = vmatpush1.bf16.msra.mxu0 %v167
  %190 = vmatprep.subr.bf16.mxu0 0
  %191 = vmatpush1.bf16.msra.mxu0 %v168
  %192 = vmatprep.subr.bf16.mxu0 0
  %193 = vmatpush1.bf16.msra.mxu0 %v169
  %194 = vmatprep.subr.bf16.mxu0 0
  %195 = vmatpush1.bf16.msra.mxu0 0
  %196 = vmatprep.subr.bf16.mxu0 0
  %197 = vmatpush1.bf16.msra.mxu0 0
  %198 = vmatprep.subr.bf16.mxu0 0
  %199 = vmatpush1.bf16.msra.mxu0 0
  %200 = vmatprep.subr.bf16.mxu0 0
  %201 = vmatpush1.bf16.msra.mxu0 0
  %202 = vmatprep.subr.bf16.mxu0 0
  %203 = vmatpush1.bf16.msra.mxu0 0
  %204 = vmatprep.subr.bf16.mxu0 0
  %205 = vmatpush1.bf16.msra.mxu0 0
  %206 = vmatprep.subr.bf16.mxu0 0
  %207 = vmatpush1.bf16.msra.mxu0 0
  %208 = vmatprep.subr.bf16.mxu0 0
  %209 = vmatpush1.bf16.msra.mxu0 0
  %210 = vmatprep.mubr.bf16.mxu0 0
  %211 = vmatmul.mubr.bf16.gmra.mrb[0].mxu0 %v106
  %v212 = vpop.f32.mrb[0].mxu0
  %v213 = vadd.f32 %v128, %v212
  %v214 = vpop.f32.mrb[0].mxu0
  %v215 = vpop.f32.mrb[0].mxu0
  %v216 = vadd.f32 %v128, %v215
  %v217 = vpop.f32.mrb[0].mxu0
  %218 = vdwg.mxu0
  %v219 = vmul.f32 %v213, 0.01
  %v220 = vmul.f32 %v216, 0.01
  %v221 = vmax.f32 %v213, %v219
  %v222 = vmax.f32 %v216, %v220
  %v223 = vpack.c.bf16 %v222, %v221
  %v224 = vld [vmem:[%s5] sm:$0xf]
  %v225 = vld [vmem:[%s5 + $0x4] sm:$0xf]
  %v226 = vld [vmem:[%s5 + $0x8] sm:$0xf]
  %v227 = vld [vmem:[%s5 + $0xc] sm:$0xf]
  %v228 = vld [vmem:[%s5 + $0x10] sm:$0xf]
  %v229 = vld [vmem:[%s5 + $0x14] sm:$0xf]
  %v230 = vld [vmem:[%s5 + $0x18] sm:$0xf]
  %v231 = vld [vmem:[%s5 + $0x1c] sm:$0xf]
  %v232 = vld [vmem:[%s5 + $0x20] sm:$0xf]
  %v233 = vld [vmem:[%s5 + $0x24] sm:$0xf]
  %v234 = vld [vmem:[%s5 + $0x28] sm:$0xf]
  %v235 = vld [vmem:[%s5 + $0x2c] sm:$0xf]
  %v236 = vld [vmem:[%s5 + $0x30] sm:$0xf]
  %v237 = vld [vmem:[%s5 + $0x34] sm:$0xf]
  %v238 = vld [vmem:[%s5 + $0x38] sm:$0xf]
  %v239 = vld [vmem:[%s5 + $0x3c] sm:$0xf]
  %v240 = vld [vmem:[%s6] sm:$0x1]
  %v242 = vlaneseq
  %v243 = vshrl.u32 %v242, 7
  %v244 = vsub.s32 0, %v243
  %v245 = vrot.slane %v240, %v244
  %v263 = vunpack.c.l.b16 %v224
  %v264 = vunpack.c.l.b16 %v225
  %v265 = vunpack.c.l.b16 %v226
  %v266 = vunpack.c.l.b16 %v227
  %v267 = vunpack.c.l.b16 %v228
  %v268 = vunpack.c.l.b16 %v229
  %v269 = vunpack.c.l.b16 %v230
  %v270 = vunpack.c.l.b16 %v231
  %v271 = vunpack.c.l.b16 %v232
  %v272 = vunpack.c.l.b16 %v233
  %v273 = vunpack.c.l.b16 %v234
  %v274 = vunpack.c.l.b16 %v235
  %v275 = vunpack.c.l.b16 %v236
  %v276 = vunpack.c.l.b16 %v237
  %v277 = vunpack.c.l.b16 %v238
  %v278 = vunpack.c.l.b16 %v239
  %v279 = vpack.c.b16 %v264, %v263
  %v280 = vpack.c.b16 %v266, %v265
  %v281 = vpack.c.b16 %v268, %v267
  %v282 = vpack.c.b16 %v270, %v269
  %v283 = vpack.c.b16 %v272, %v271
  %v284 = vpack.c.b16 %v274, %v273
  %v285 = vpack.c.b16 %v276, %v275
  %v286 = vpack.c.b16 %v278, %v277
  %295 = vmatprep.subr.bf16.mxu0 0
  %296 = vmatpush1.bf16.msra.mxu0 %v279
  %297 = vmatprep.subr.bf16.mxu0 0
  %298 = vmatpush1.bf16.msra.mxu0 %v280
  %299 = vmatprep.subr.bf16.mxu0 0
  %300 = vmatpush1.bf16.msra.mxu0 %v281
  %301 = vmatprep.subr.bf16.mxu0 0
  %302 = vmatpush1.bf16.msra.mxu0 %v282
  %303 = vmatprep.subr.bf16.mxu0 0
  %304 = vmatpush1.bf16.msra.mxu0 %v283
  %305 = vmatprep.subr.bf16.mxu0 0
  %306 = vmatpush1.bf16.msra.mxu0 %v284
  %307 = vmatprep.subr.bf16.mxu0 0
  %308 = vmatpush1.bf16.msra.mxu0 %v285
  %309 = vmatprep.subr.bf16.mxu0 0
  %310 = vmatpush1.bf16.msra.mxu0 %v286
  %311 = vmatprep.subr.bf16.mxu0 0
  %312 = vmatpush1.bf16.msra.mxu0 0
  %313 = vmatprep.subr.bf16.mxu0 0
  %314 = vmatpush1.bf16.msra.mxu0 0
  %315 = vmatprep.subr.bf16.mxu0 0
  %316 = vmatpush1.bf16.msra.mxu0 0
  %317 = vmatprep.subr.bf16.mxu0 0
  %318 = vmatpush1.bf16.msra.mxu0 0
  %319 = vmatprep.subr.bf16.mxu0 0
  %320 = vmatpush1.bf16.msra.mxu0 0
  %321 = vmatprep.subr.bf16.mxu0 0
  %322 = vmatpush1.bf16.msra.mxu0 0
  %323 = vmatprep.subr.bf16.mxu0 0
  %324 = vmatpush1.bf16.msra.mxu0 0
  %325 = vmatprep.subr.bf16.mxu0 0
  %326 = vmatpush1.bf16.msra.mxu0 0
  %327 = vmatprep.mubr.bf16.mxu0 0
  %328 = vmatmul.mubr.bf16.gmra.mrb[0].mxu0 %v223
  %v329 = vpop.f32.mrb[0].mxu0
  %v330 = vadd.f32 %v245, %v329
  %v331 = vpop.f32.mrb[0].mxu0
  %v332 = vpop.f32.mrb[0].mxu0
  %v333 = vadd.f32 %v245, %v332
  %v334 = vpop.f32.mrb[0].mxu0
  %335 = vdwg.mxu0
  %336 = vst [vmem:[%s7] sm:$0xff] %v330
  %337 = vst [vmem:[%s7 + $0x8] sm:$0xff] %v333
  // Predicated region
  $region30: #{_forward.1} parent=0 // pred_check
    _
  $region31: #{_forward.1} parent=0 // pred_check_branch
    %339 = sbr.rel (0) target = $region33
  $region32: #{_forward.1} parent=0 // pred_region
    _
  $region33: #{_forward.1} parent=0 // pred_fallthru
    _
  // Predicated region
  $region34: #{_forward.1} parent=0 // pred_check
    _
  $region35: #{_forward.1} parent=0 // pred_check_branch
    %341 = sbr.rel (0) target = $region37
  $region36: #{_forward.1} parent=0 // pred_region
    _
  $region37: #{_forward.1} parent=0 // pred_fallthru
    _

// kernel: _forward.1
$region0: #{_forward.1}
  #allocation0 [shape = 'u32[]', space=smem, size = 0x4, offset = 0x4, fixed_abs, tag = 'smem constant byte address 0x4 - core index']
  #allocation1 [shape = 'u32[144,128]{1,0:T(1,128)}', space=vmem, size = 0x12000, scoped, tag = 'internal scratch']
  %s0 = inlined_call_operand.vmem [shape: bf16[16,32], index: 0, kind: input, shape index: {}]
  %s1 = inlined_call_operand.vmem [shape: bf16[32,128], index: 1, kind: input, shape index: {}]
  %s2 = inlined_call_operand.vmem [shape: f32[1,128], index: 2, kind: input, shape index: {}]
  %s3 = inlined_call_operand.vmem [shape: bf16[128,128], index: 3, kind: input, shape index: {}]
  %s4 = inlined_call_operand.vmem [shape: f32[1,128], index: 4, kind: input, shape index: {}]
  %s5 = inlined_call_operand.vmem [shape: bf16[128,128], index: 5, kind: input, shape index: {}]
  %s6 = inlined_call_operand.vmem [shape: f32[1,128], index: 6, kind: input, shape index: {}]
  %s7 = inlined_call_operand.vmem [shape: f32[16,128], index: 7, kind: output, shape index: {}]
  %s8 = sld [smem:[#allocation0]]
  $region38: #{_forward.1} parent=0
    _
  %s10 = ssub.s32 1, %s8
  %s11 = scalar_select 0, %s10, %s8
  // Predicated region
  $region2: #{_forward.1} parent=0 // pred_check
    _
  $region3: #{_forward.1} parent=0 // pred_check_branch
    %13 = sbr.rel (0) target = $region5
  $region4: #{_forward.1} parent=0 // pred_region
    _
  $region5: #{_forward.1} parent=0 // pred_fallthru
    _
  // Predicated region
  $region6: #{_forward.1} parent=0 // pred_check
    _
  $region7: #{_forward.1} parent=0 // pred_check_branch
    %15 = sbr.rel (0) target = $region9
  $region8: #{_forward.1} parent=0 // pred_region
    _
  $region9: #{_forward.1} parent=0 // pred_fallthru
    _
  // Predicated region
  $region10: #{_forward.1} parent=0 // pred_check
    _
  $region11: #{_forward.1} parent=0 // pred_check_branch
    %17 = sbr.rel (0) target = $region13
  $region12: #{_forward.1} parent=0 // pred_region
    _
  $region13: #{_forward.1} parent=0 // pred_fallthru
    _
  // Predicated region
  $region14: #{_forward.1} parent=0 // pred_check
    _
  $region15: #{_forward.1} parent=0 // pred_check_branch
    %19 = sbr.rel (0) target = $region17
  $region16: #{_forward.1} parent=0 // pred_region
    _
  $region17: #{_forward.1} parent=0 // pred_fallthru
    _
  // Predicated region
  $region18: #{_forward.1} parent=0 // pred_check
    _
  $region19: #{_forward.1} parent=0 // pred_check_branch
    %21 = sbr.rel (0) target = $region21
  $region20: #{_forward.1} parent=0 // pred_region
    _
  $region21: #{_forward.1} parent=0 // pred_fallthru
    _
  // Predicated region
  $region22: #{_forward.1} parent=0 // pred_check
    _
  $region23: #{_forward.1} parent=0 // pred_check_branch
    %23 = sbr.rel (0) target = $region25
  $region24: #{_forward.1} parent=0 // pred_region
    _
  $region25: #{_forward.1} parent=0 // pred_fallthru
    _
  // Predicated region
  $region26: #{_forward.1} parent=0 // pred_check
    _
  $region27: #{_forward.1} parent=0 // pred_check_branch
    %25 = sbr.rel (0) target = $region29
  $region28: #{_forward.1} parent=0 // pred_region
    _
  $region29: #{_forward.1} parent=0 // pred_fallthru
    _
  %v27 = vld [vmem:[%s0] sm:$0xf]
  %v28 = vld [vmem:[%s0 + $0x4] sm:$0xf]
  %v29 = vld [vmem:[%s1] sm:$0xf]
  %v30 = vld [vmem:[%s1 + $0x4] sm:$0xf]
  %v31 = vld [vmem:[%s1 + $0x8] sm:$0xf]
  %v32 = vld [vmem:[%s1 + $0xc] sm:$0xf]
  %v33 = vld [vmem:[%s2] sm:$0x1]
  %v35 = vlaneseq
  %v36 = vshrl.u32 %v35, 7
  %v37 = vsub.s32 0, %v36
  %v38 = vrot.slane %v33, %v37
  %v42 = vunpack.c.l.b16 %v27
  %v43 = vunpack.c.l.b16 %v28
  %v44 = vpack.c.b16 %v43, %v42
  %v49 = vunpack.c.l.b16 %v29
  %v50 = vunpack.c.l.b16 %v30
  %v51 = vunpack.c.l.b16 %v31
  %v52 = vunpack.c.l.b16 %v32
  %v53 = vpack.c.b16 %v50, %v49
  %v54 = vpack.c.b16 %v52, %v51
  %vm57 = vcmask 261120
  %v59 = vsel %vm57, %v44, 0
  %61 = vmatprep.subr.bf16.mxu0 0
  %62 = vmatpush1.bf16.msra.mxu0 %v53
  %63 = vmatprep.subr.bf16.mxu0 0
  %64 = vmatpush1.bf16.msra.mxu0 %v54
  %65 = vmatprep.subr.bf16.mxu0 0
  %66 = vmatpush1.bf16.msra.mxu0 0
  %67 = vmatprep.subr.bf16.mxu0 0
  %68 = vmatpush1.bf16.msra.mxu0 0
  %69 = vmatprep.subr.bf16.mxu0 0
  %70 = vmatpush1.bf16.msra.mxu0 0
  %71 = vmatprep.subr.bf16.mxu0 0
  %72 = vmatpush1.bf16.msra.mxu0 0
  %73 = vmatprep.subr.bf16.mxu0 0
  %74 = vmatpush1.bf16.msra.mxu0 0
  %75 = vmatprep.subr.bf16.mxu0 0
  %76 = vmatpush1.bf16.msra.mxu0 0
  %77 = vmatprep.subr.bf16.mxu0 0
  %78 = vmatpush1.bf16.msra.mxu0 0
  %79 = vmatprep.subr.bf16.mxu0 0
  %80 = vmatpush1.bf16.msra.mxu0 0
  %81 = vmatprep.subr.bf16.mxu0 0
  %82 = vmatpush1.bf16.msra.mxu0 0
  %83 = vmatprep.subr.bf16.mxu0 0
  %84 = vmatpush1.bf16.msra.mxu0 0
  %85 = vmatprep.subr.bf16.mxu0 0
  %86 = vmatpush1.bf16.msra.mxu0 0
  %87 = vmatprep.subr.bf16.mxu0 0
  %88 = vmatpush1.bf16.msra.mxu0 0
  %89 = vmatprep.subr.bf16.mxu0 0
  %90 = vmatpush1.bf16.msra.mxu0 0
  %91 = vmatprep.subr.bf16.mxu0 0
  %92 = vmatpush1.bf16.msra.mxu0 0
  %93 = vmatprep.mubr.bf16.mxu0 0
  %94 = vmatmul.mubr.bf16.gmra.mrb[0].mxu0 %v59
  %v95 = vpop.f32.mrb[0].mxu0
  %v96 = vadd.f32 %v38, %v95
  %v97 = vpop.f32.mrb[0].mxu0
  %v98 = vpop.f32.mrb[0].mxu0
  %v99 = vadd.f32 %v38, %v98
  %v100 = vpop.f32.mrb[0].mxu0
  %101 = vdwg.mxu0
  %v102 = vmul.f32 %v96, 0.01
  %v103 = vmul.f32 %v99, 0.01
  %v104 = vmax.f32 %v96, %v102
  %v105 = vmax.f32 %v99, %v103
  %v106 = vpack.c.bf16 %v105, %v104
  %v107 = vld [vmem:[%s3] sm:$0xf]
  %v108 = vld [vmem:[%s3 + $0x4] sm:$0xf]
  %v109 = vld [vmem:[%s3 + $0x8] sm:$0xf]
  %v110 = vld [vmem:[%s3 + $0xc] sm:$0xf]
  %v111 = vld [vmem:[%s3 + $0x10] sm:$0xf]
  %v112 = vld [vmem:[%s3 + $0x14] sm:$0xf]
  %v113 = vld [vmem:[%s3 + $0x18] sm:$0xf]
  %v114 = vld [vmem:[%s3 + $0x1c] sm:$0xf]
  %v115 = vld [vmem:[%s3 + $0x20] sm:$0xf]
  %v116 = vld [vmem:[%s3 + $0x24] sm:$0xf]
  %v117 = vld [vmem:[%s3 + $0x28] sm:$0xf]
  %v118 = vld [vmem:[%s3 + $0x2c] sm:$0xf]
  %v119 = vld [vmem:[%s3 + $0x30] sm:$0xf]
  %v120 = vld [vmem:[%s3 + $0x34] sm:$0xf]
  %v121 = vld [vmem:[%s3 + $0x38] sm:$0xf]
  %v122 = vld [vmem:[%s3 + $0x3c] sm:$0xf]
  %v123 = vld [vmem:[%s4] sm:$0x1]
  %v125 = vlaneseq
  %v126 = vshrl.u32 %v125, 7
  %v127 = vsub.s32 0, %v126
  %v128 = vrot.slane %v123, %v127
  %v146 = vunpack.c.l.b16 %v107
  %v147 = vunpack.c.l.b16 %v108
  %v148 = vunpack.c.l.b16 %v109
  %v149 = vunpack.c.l.b16 %v110
  %v150 = vunpack.c.l.b16 %v111
  %v151 = vunpack.c.l.b16 %v112
  %v152 = vunpack.c.l.b16 %v113
  %v153 = vunpack.c.l.b16 %v114
  %v154 = vunpack.c.l.b16 %v115
  %v155 = vunpack.c.l.b16 %v116
  %v156 = vunpack.c.l.b16 %v117
  %v157 = vunpack.c.l.b16 %v118
  %v158 = vunpack.c.l.b16 %v119
  %v159 = vunpack.c.l.b16 %v120
  %v160 = vunpack.c.l.b16 %v121
  %v161 = vunpack.c.l.b16 %v122
  %v162 = vpack.c.b16 %v147, %v146
  %v163 = vpack.c.b16 %v149, %v148
  %v164 = vpack.c.b16 %v151, %v150
  %v165 = vpack.c.b16 %v153, %v152
  %v166 = vpack.c.b16 %v155, %v154
  %v167 = vpack.c.b16 %v157, %v156
  %v168 = vpack.c.b16 %v159, %v158
  %v169 = vpack.c.b16 %v161, %v160
  %178 = vmatprep.subr.bf16.mxu0 0
  %179 = vmatpush1.bf16.msra.mxu0 %v162
  %180 = vmatprep.subr.bf16.mxu0 0
  %181 = vmatpush1.bf16.msra.mxu0 %v163
  %182 = vmatprep.subr.bf16.mxu0 0
  %183 = vmatpush1.bf16.msra.mxu0 %v164
  %184 = vmatprep.subr.bf16.mxu0 0
  %185 = vmatpush1.bf16.msra.mxu0 %v165
  %186 = vmatprep.subr.bf16.mxu0 0
  %187 = vmatpush1.bf16.msra.mxu0 %v166
  %188 = vmatprep.subr.bf16.mxu0 0
  %189 = vmatpush1.bf16.msra.mxu0 %v167
  %190 = vmatprep.subr.bf16.mxu0 0
  %191 = vmatpush1.bf16.msra.mxu0 %v168
  %192 = vmatprep.subr.bf16.mxu0 0
  %193 = vmatpush1.bf16.msra.mxu0 %v169
  %194 = vmatprep.subr.bf16.mxu0 0
  %195 = vmatpush1.bf16.msra.mxu0 0
  %196 = vmatprep.subr.bf16.mxu0 0
  %197 = vmatpush1.bf16.msra.mxu0 0
  %198 = vmatprep.subr.bf16.mxu0 0
  %199 = vmatpush1.bf16.msra.mxu0 0
  %200 = vmatprep.subr.bf16.mxu0 0
  %201 = vmatpush1.bf16.msra.mxu0 0
  %202 = vmatprep.subr.bf16.mxu0 0
  %203 = vmatpush1.bf16.msra.mxu0 0
  %204 = vmatprep.subr.bf16.mxu0 0
  %205 = vmatpush1.bf16.msra.mxu0 0
  %206 = vmatprep.subr.bf16.mxu0 0
  %207 = vmatpush1.bf16.msra.mxu0 0
  %208 = vmatprep.subr.bf16.mxu0 0
  %209 = vmatpush1.bf16.msra.mxu0 0
  %210 = vmatprep.mubr.bf16.mxu0 0
  %211 = vmatmul.mubr.bf16.gmra.mrb[0].mxu0 %v106
  %v212 = vpop.f32.mrb[0].mxu0
  %v213 = vadd.f32 %v128, %v212
  %v214 = vpop.f32.mrb[0].mxu0
  %v215 = vpop.f32.mrb[0].mxu0
  %v216 = vadd.f32 %v128, %v215
  %v217 = vpop.f32.mrb[0].mxu0
  %218 = vdwg.mxu0
  %v219 = vmul.f32 %v213, 0.01
  %v220 = vmul.f32 %v216, 0.01
  %v221 = vmax.f32 %v213, %v219
  %v222 = vmax.f32 %v216, %v220
  %v223 = vpack.c.bf16 %v222, %v221
  %v224 = vld [vmem:[%s5] sm:$0xf]
  %v225 = vld [vmem:[%s5 + $0x4] sm:$0xf]
  %v226 = vld [vmem:[%s5 + $0x8] sm:$0xf]
  %v227 = vld [vmem:[%s5 + $0xc] sm:$0xf]
  %v228 = vld [vmem:[%s5 + $0x10] sm:$0xf]
  %v229 = vld [vmem:[%s5 + $0x14] sm:$0xf]
  %v230 = vld [vmem:[%s5 + $0x18] sm:$0xf]
  %v231 = vld [vmem:[%s5 + $0x1c] sm:$0xf]
  %v232 = vld [vmem:[%s5 + $0x20] sm:$0xf]
  %v233 = vld [vmem:[%s5 + $0x24] sm:$0xf]
  %v234 = vld [vmem:[%s5 + $0x28] sm:$0xf]
  %v235 = vld [vmem:[%s5 + $0x2c] sm:$0xf]
  %v236 = vld [vmem:[%s5 + $0x30] sm:$0xf]
  %v237 = vld [vmem:[%s5 + $0x34] sm:$0xf]
  %v238 = vld [vmem:[%s5 + $0x38] sm:$0xf]
  %v239 = vld [vmem:[%s5 + $0x3c] sm:$0xf]
  %v240 = vld [vmem:[%s6] sm:$0x1]
  %v242 = vlaneseq
  %v243 = vshrl.u32 %v242, 7
  %v244 = vsub.s32 0, %v243
  %v245 = vrot.slane %v240, %v244
  %v263 = vunpack.c.l.b16 %v224
  %v264 = vunpack.c.l.b16 %v225
  %v265 = vunpack.c.l.b16 %v226
  %v266 = vunpack.c.l.b16 %v227
  %v267 = vunpack.c.l.b16 %v228
  %v268 = vunpack.c.l.b16 %v229
  %v269 = vunpack.c.l.b16 %v230
  %v270 = vunpack.c.l.b16 %v231
  %v271 = vunpack.c.l.b16 %v232
  %v272 = vunpack.c.l.b16 %v233
  %v273 = vunpack.c.l.b16 %v234
  %v274 = vunpack.c.l.b16 %v235
  %v275 = vunpack.c.l.b16 %v236
  %v276 = vunpack.c.l.b16 %v237
  %v277 = vunpack.c.l.b16 %v238
  %v278 = vunpack.c.l.b16 %v239
  %v279 = vpack.c.b16 %v264, %v263
  %v280 = vpack.c.b16 %v266, %v265
  %v281 = vpack.c.b16 %v268, %v267
  %v282 = vpack.c.b16 %v270, %v269
  %v283 = vpack.c.b16 %v272, %v271
  %v284 = vpack.c.b16 %v274, %v273
  %v285 = vpack.c.b16 %v276, %v275
  %v286 = vpack.c.b16 %v278, %v277
  %295 = vmatprep.subr.bf16.mxu0 0
  %296 = vmatpush1.bf16.msra.mxu0 %v279
  %297 = vmatprep.subr.bf16.mxu0 0
  %298 = vmatpush1.bf16.msra.mxu0 %v280
  %299 = vmatprep.subr.bf16.mxu0 0
  %300 = vmatpush1.bf16.msra.mxu0 %v281
  %301 = vmatprep.subr.bf16.mxu0 0
  %302 = vmatpush1.bf16.msra.mxu0 %v282
  %303 = vmatprep.subr.bf16.mxu0 0
  %304 = vmatpush1.bf16.msra.mxu0 %v283
  %305 = vmatprep.subr.bf16.mxu0 0
  %306 = vmatpush1.bf16.msra.mxu0 %v284
  %307 = vmatprep.subr.bf16.mxu0 0
  %308 = vmatpush1.bf16.msra.mxu0 %v285
  %309 = vmatprep.subr.bf16.mxu0 0
  %310 = vmatpush1.bf16.msra.mxu0 %v286
  %311 = vmatprep.subr.bf16.mxu0 0
  %312 = vmatpush1.bf16.msra.mxu0 0
  %313 = vmatprep.subr.bf16.mxu0 0
  %314 = vmatpush1.bf16.msra.mxu0 0
  %315 = vmatprep.subr.bf16.mxu0 0
  %316 = vmatpush1.bf16.msra.mxu0 0
  %317 = vmatprep.subr.bf16.mxu0 0
  %318 = vmatpush1.bf16.msra.mxu0 0
  %319 = vmatprep.subr.bf16.mxu0 0
  %320 = vmatpush1.bf16.msra.mxu0 0
  %321 = vmatprep.subr.bf16.mxu0 0
  %322 = vmatpush1.bf16.msra.mxu0 0
  %323 = vmatprep.subr.bf16.mxu0 0
  %324 = vmatpush1.bf16.msra.mxu0 0
  %325 = vmatprep.subr.bf16.mxu0 0
  %326 = vmatpush1.bf16.msra.mxu0 0
  %327 = vmatprep.mubr.bf16.mxu0 0
  %328 = vmatmul.mubr.bf16.gmra.mrb[0].mxu0 %v223
  %v329 = vpop.f32.mrb[0].mxu0
  %v330 = vadd.f32 %v245, %v329
  %v331 = vpop.f32.mrb[0].mxu0
  %v332 = vpop.f32.mrb[0].mxu0
  %v333 = vadd.f32 %v245, %v332
  %v334 = vpop.f32.mrb[0].mxu0
  %335 = vdwg.mxu0
  %336 = vst [vmem:[%s7] sm:$0xff] %v330
  %337 = vst [vmem:[%s7 + $0x8] sm:$0xff] %v333
  // Predicated region
  $region30: #{_forward.1} parent=0 // pred_check
    _
  $region31: #{_forward.1} parent=0 // pred_check_branch
    %339 = sbr.rel (0) target = $region33
  $region32: #{_forward.1} parent=0 // pred_region
    _
  $region33: #{_forward.1} parent=0 // pred_fallthru
    _
  // Predicated region
  $region34: #{_forward.1} parent=0 // pred_check
    _
  $region35: #{_forward.1} parent=0 // pred_check_branch
    %341 = sbr.rel (0) target = $region37
  $region36: #{_forward.1} parent=0 // pred_region
    _
  $region37: #{_forward.1} parent=0 // pred_fallthru
    _

</llo_original>
